<compile_context>
chip_gen: v7x
topology: tpu7x:2x2x1
jax: 0.10.0
libtpu: 0.0.40
codegen_flags: <defaults>
</compile_context>

<pallas_src>
import functools

import jax
import jax.numpy as jnp
from jax.experimental import pallas as pl
from jax.experimental.pallas import tpu as pltpu


# ----------------------------------------------------------------------------
# Kernel
# ----------------------------------------------------------------------------
def _layernorm_kernel(x_ref, g_ref, b_ref, o_ref, *, eps, inv_c):
    # x_ref: (Bt, C, T)   g_ref / b_ref: (C, 128)   o_ref: (Bt, C, T)
    x = x_ref[...].astype(jnp.float32)
    mean = jnp.sum(x, axis=1, keepdims=True) * inv_c            # (Bt, 1, T)
    xc = x - mean                                               # reused twice
    var = jnp.sum(xc * xc, axis=1, keepdims=True) * inv_c       # biased variance
    inv = pl.reciprocal(jnp.sqrt(var) + eps)                    # exact 1/(std+eps)
    g = g_ref[:, :1]                                            # (C, 1) VPU broadcast
    b = b_ref[:, :1]
    o_ref[...] = (xc * inv * g + b).astype(o_ref.dtype)


# ----------------------------------------------------------------------------
# Generation-aware VMEM budgeting + tile selection
# ----------------------------------------------------------------------------
def _vmem_config():
    """Returns (per_block_budget_bytes, vmem_limit_bytes)."""
    try:
        vmem_bytes = int(pltpu.get_tpu_info().vmem_capacity_bytes)
    except Exception:
        vmem_bytes = 64 << 20          # most restrictive case (v7x per-TC)
    # x + out are each double-buffered -> 4 blocks in flight; keep headroom.
    per_block = max(1 << 20, min(6 << 20, vmem_bytes // 16))
    vmem_limit = min(3 * vmem_bytes // 4, 96 << 20)
    return per_block, vmem_limit


def _choose_tiles(B, C, HW_pad, itemsize, budget_bytes):
    """Pick (Bt, T): largest multiple-of-128 divisor T of HW_pad with the
    (C, T) block under budget; pack batches when a single tile covers the
    whole image; keep >= 2 grid steps for v7x's two TensorCores."""
    T = 128
    for d in range(128, HW_pad + 1, 128):
        if HW_pad % d == 0 and C * d * itemsize <= budget_bytes:
            T = d
    Bt = 1
    if T == HW_pad:
        for bt in range(B, 1, -1):
            if B % bt == 0 and bt * C * T * itemsize <= budget_bytes:
                Bt = bt
                break
    # Guarantee at least 2 parallel grid steps where possible.
    if (B // Bt) * (HW_pad // T) < 2:
        if Bt > 1:
            for bt in range(Bt // 2, 0, -1):
                if B % bt == 0:
                    Bt = bt
                    break
        elif T % 256 == 0:
            T //= 2
    return Bt, T


# ----------------------------------------------------------------------------
# Wrapper
# ----------------------------------------------------------------------------
def layernorm_nchw(x, g, b, eps=1e-5):
    """x: (B, C, H, W);  g, b: (1, C, 1, 1).  Returns same shape/dtype as x."""
    B, C, H, W = x.shape
    HW = H * W
    HW_pad = ((HW + 127) // 128) * 128
    itemsize = jnp.dtype(x.dtype).itemsize

    budget, vmem_limit = _vmem_config()
    Bt, T = _choose_tiles(B, C, HW_pad, itemsize, budget)

    x3 = x.reshape(B, C, HW)                       # free reshape; HW is lane dim
    if HW_pad != HW:
        # Pad-and-slice keeps lane-dense 128-multiple tiles and a deep pipeline.
        x3 = jnp.pad(x3, ((0, 0), (0, 0), (0, HW_pad - HW)))

    # Tiny lane-dense resident per-channel params (constant index_map).
    g2 = jnp.broadcast_to(g.reshape(C, 1).astype(jnp.float32), (C, 128))
    b2 = jnp.broadcast_to(b.reshape(C, 1).astype(jnp.float32), (C, 128))

    grid = (B // Bt, HW_pad // T)
    out = pl.pallas_call(
        functools.partial(_layernorm_kernel, eps=float(eps), inv_c=1.0 / C),
        out_shape=jax.ShapeDtypeStruct((B, C, HW_pad), x.dtype),
        grid=grid,
        in_specs=[
            pl.BlockSpec((Bt, C, T), lambda i, j: (i, 0, j)),
            pl.BlockSpec((C, 128), lambda i, j: (0, 0)),
            pl.BlockSpec((C, 128), lambda i, j: (0, 0)),
        ],
        out_specs=pl.BlockSpec((Bt, C, T), lambda i, j: (i, 0, j)),
        compiler_params=pltpu.CompilerParams(
            dimension_semantics=("parallel", "parallel"),
            vmem_limit_bytes=vmem_limit,
        ),
    )(x3, g2, b2)

    if HW_pad != HW:
        out = out[:, :, :HW]
    return out.reshape(B, C, H, W)


# ----------------------------------------------------------------------------
# Pure-JAX reference (matches the PyTorch module exactly)
# ----------------------------------------------------------------------------
def layernorm_ref(x, g, b, eps=1e-5):
    xf = x.astype(jnp.float32)
    mean = jnp.mean(xf, axis=1, keepdims=True)
    var = jnp.mean((xf - mean) ** 2, axis=1, keepdims=True)   # unbiased=False
    std = jnp.sqrt(var)
    return ((xf - mean) / (std + eps) * g + b).astype(x.dtype)


# ----------------------------------------------------------------------------
# main
# ----------------------------------------------------------------------------
if __name__ == "__main__":
    B, C, H, W = 2, 32, 16, 16
    EPS = 1e-5

    key = jax.random.PRNGKey(0)
    kx, kg, kb = jax.random.split(key, 3)
    x = jax.random.normal(kx, (B, C, H, W), jnp.float32)
    # Module initializes g=ones, b=zeros; perturb slightly so the affine path
    # is actually exercised by the correctness check.
    g = 1.0 + 0.1 * jax.random.normal(kg, (1, C, 1, 1), jnp.float32)
    b = 0.1 * jax.random.normal(kb, (1, C, 1, 1), jnp.float32)

    fwd = jax.jit(functools.partial(layernorm_nchw, eps=EPS))
    out = jax.block_until_ready(fwd(x, g, b))

    ref = layernorm_ref(x, g, b, EPS)
    assert out.shape == (B, C, H, W), out.shape
    assert bool(jnp.all(jnp.isfinite(out)))
    max_err = float(jnp.max(jnp.abs(out - ref)))
    assert max_err < 1e-4, max_err
    print("KERNEL_OK")
</pallas_src>

<mosaic_0001>
module attributes {stable_mosaic.version = 11 : i64} {
  func.func @_layernorm_kernel(%arg0: i32, %arg1: i32, %arg2: memref<1x32x256xf32, #tpu.memory_space<vmem>>, %arg3: memref<32x128xf32, #tpu.memory_space<vmem>>, %arg4: memref<32x128xf32, #tpu.memory_space<vmem>>, %arg5: memref<1x32x256xf32, #tpu.memory_space<vmem>>) attributes {dimension_semantics = [#tpu.dimension_semantics<parallel>, #tpu.dimension_semantics<parallel>], iteration_bounds = array<i64: 2, 1>, scalar_prefetch = 0 : i64, scratch_operands = 0 : i64, tpu.core_type = #tpu.core_type<tc>, window_params = [{transform_indices = @transform_0, window_bounds = array<i64: 1, 32, 256>}, {pipeline_mode = #tpu.pipeline_mode<synchronous>, transform_indices = @transform_1, window_bounds = array<i64: 32, 128>}, {pipeline_mode = #tpu.pipeline_mode<synchronous>, transform_indices = @transform_2, window_bounds = array<i64: 32, 128>}, {transform_indices = @transform_3, window_bounds = array<i64: 1, 32, 256>}]} {
    %c0 = arith.constant 0 : index
    %c0_0 = arith.constant 0 : index
    %c0_1 = arith.constant 0 : index
    %0 = vector.load %arg2[%c0, %c0_0, %c0_1] : memref<1x32x256xf32, #tpu.memory_space<vmem>>, vector<1x32x256xf32>
    %cst = arith.constant dense<0.000000e+00> : vector<1x256xf32>
    %1 = vector.multi_reduction <add>, %0, %cst [1] : vector<1x32x256xf32> to vector<1x256xf32>
    %2 = vector.shape_cast %1 : vector<1x256xf32> to vector<1x1x256xf32>
    %cst_2 = arith.constant 3.125000e-02 : f32
    %3 = vector.broadcast %cst_2 : f32 to vector<1x1x256xf32>
    %4 = arith.mulf %2, %3 : vector<1x1x256xf32>
    %5 = vector.broadcast %4 : vector<1x1x256xf32> to vector<1x32x256xf32>
    %6 = arith.subf %0, %5 : vector<1x32x256xf32>
    %7 = arith.mulf %6, %6 : vector<1x32x256xf32>
    %cst_3 = arith.constant dense<0.000000e+00> : vector<1x256xf32>
    %8 = vector.multi_reduction <add>, %7, %cst_3 [1] : vector<1x32x256xf32> to vector<1x256xf32>
    %9 = vector.shape_cast %8 : vector<1x256xf32> to vector<1x1x256xf32>
    %cst_4 = arith.constant 3.125000e-02 : f32
    %10 = vector.broadcast %cst_4 : f32 to vector<1x1x256xf32>
    %11 = arith.mulf %9, %10 : vector<1x1x256xf32>
    %12 = math.sqrt %11 : vector<1x1x256xf32>
    %cst_5 = arith.constant 9.99999974E-6 : f32
    %13 = vector.broadcast %cst_5 : f32 to vector<1x1x256xf32>
    %14 = arith.addf %12, %13 : vector<1x1x256xf32>
    %15 = tpu.reciprocal %14 : vector<1x1x256xf32> -> vector<1x1x256xf32>
    %c0_6 = arith.constant 0 : index
    %c0_7 = arith.constant 0 : index
    %16 = vector.load %arg3[%c0_6, %c0_7] : memref<32x128xf32, #tpu.memory_space<vmem>>, vector<32x1xf32>
    %c0_8 = arith.constant 0 : index
    %c0_9 = arith.constant 0 : index
    %17 = vector.load %arg4[%c0_8, %c0_9] : memref<32x128xf32, #tpu.memory_space<vmem>>, vector<32x1xf32>
    %18 = vector.broadcast %15 : vector<1x1x256xf32> to vector<1x32x256xf32>
    %19 = arith.mulf %6, %18 : vector<1x32x256xf32>
    %20 = vector.shape_cast %16 : vector<32x1xf32> to vector<1x32x1xf32>
    %21 = vector.broadcast %20 : vector<1x32x1xf32> to vector<1x32x256xf32>
    %22 = arith.mulf %19, %21 : vector<1x32x256xf32>
    %23 = vector.shape_cast %17 : vector<32x1xf32> to vector<1x32x1xf32>
    %24 = vector.broadcast %23 : vector<1x32x1xf32> to vector<1x32x256xf32>
    %25 = arith.addf %22, %24 : vector<1x32x256xf32>
    %c0_10 = arith.constant 0 : index
    %c0_11 = arith.constant 0 : index
    %c0_12 = arith.constant 0 : index
    %26 = vector.load %arg5[%c0_10, %c0_11, %c0_12] : memref<1x32x256xf32, #tpu.memory_space<vmem>>, vector<1x32x256xf32>
    tpu.vector_store %arg5[%c0_10, %c0_11, %c0_12], %25 {strides = array<i32>} : memref<1x32x256xf32, #tpu.memory_space<vmem>>, vector<1x32x256xf32>,
    return
  }
  func.func @transform_0(%arg0: i32, %arg1: i32) -> (i32, i32, i32) {
    %c0_i32 = arith.constant 0 : i32
    %c0_i32_0 = arith.constant 0 : i32
    return %arg0, %c0_i32, %arg1 : i32, i32, i32
  }
  func.func @transform_1(%arg0: i32, %arg1: i32) -> (i32, i32) {
    %c0_i32 = arith.constant 0 : i32
    %c0_i32_0 = arith.constant 0 : i32
    %c0_i32_1 = arith.constant 0 : i32
    return %c0_i32, %c0_i32_0 : i32, i32
  }
  func.func @transform_2(%arg0: i32, %arg1: i32) -> (i32, i32) {
    %c0_i32 = arith.constant 0 : i32
    %c0_i32_0 = arith.constant 0 : i32
    %c0_i32_1 = arith.constant 0 : i32
    return %c0_i32, %c0_i32_0 : i32, i32
  }
  func.func @transform_3(%arg0: i32, %arg1: i32) -> (i32, i32, i32) {
    %c0_i32 = arith.constant 0 : i32
    %c0_i32_0 = arith.constant 0 : i32
    return %arg0, %c0_i32, %arg1 : i32, i32, i32
  }
}

</mosaic_0001>

<llo_original>
// kernel: layernorm_nchw.1
$region0: #{layernorm_nchw.1}
  #allocation0 [shape = 'u32[]', space=smem, size = 0x4, offset = 0x4, fixed_abs, tag = 'smem constant byte address 0x4 - core index']
  #allocation1 [shape = 'u32[144,128]{1,0:T(1,128)}', space=vmem, size = 0x12000, scoped, tag = 'internal scratch']
  %s0 = inlined_call_operand.vmem [shape: f32[2,32,256], index: 0, kind: input, shape index: {}]
  %s1 = inlined_call_operand.vmem [shape: f32[32,128], index: 1, kind: input, shape index: {}]
  %s2 = inlined_call_operand.vmem [shape: f32[32,128], index: 2, kind: input, shape index: {}]
  %s3 = inlined_call_operand.vmem [shape: f32[2,32,256], index: 3, kind: output, shape index: {}]
  %s4 = sld [smem:[#allocation0]]
  $region45: #{layernorm_nchw.1} parent=0
    _
  %s6 = ssub.s32 1, %s4
  %s7 = scalar_select 0, %s6, %s4
  loop: start=0, step=1, limit=4
  $region2: #{layernorm_nchw.1} parent=0 // loop_pre_header
    _
  $region3: #{layernorm_nchw.1} parent=0 // loop_header
    %s9 = sphi 0, %s13
    %p10 = scmp.ge.s32.totalorder %s9, 4
    %s16 = sphi 0, %s28
    %s17 = sphi 0, %s24
    %s18 = sphi 0, %s16
    %s19 = sphi 0, %s17
    %s20 = sphi 0, %s18
    %s21 = sphi 0, %s19
    %s33 = sphi 0, %s35
    %s36 = sphi 0, %s33
    %s37 = sphi 0, %s36
    %s53 = sphi 0, %s37
    %s57 = sphi 0, %s57
    %s59 = sphi 0, %s57
    %s60 = sphi 0, %s59
    %s74 = sphi 0, %s60
    %s78 = sphi 0, %s78
    %s80 = sphi 0, %s78
    %s81 = sphi 0, %s80
    %s95 = sphi 0, %s81
    %s103 = sphi 0, %s105
    %s106 = sphi 0, %s103
    %s107 = sphi 0, %s106
    %s123 = sphi 0, %s107
  $region4: #{layernorm_nchw.1} parent=0 // loop_header_branch
    %12 = sbr.rel (%p10) target = $region8
  $region5: #{layernorm_nchw.1} parent=0 // loop_body
    %s14 = ssub.s32 %s9, 1
    %s15 = ssub.s32 %s9, 2
    %s22 = sadd.s32 1, %s17
    %p23 = scmp.ge.s32.totalorder %s22, 1
    %s24 = scalar_select %p23, 0, %s22
    %s25 = sadd.s32 1, %s16
    %s26 = scalar_select %p23, %s25, %s16
    %p27 = scmp.ge.s32.totalorder %s26, 2
    %s28 = scalar_select %p27, 0, %s26
    %s29 = ssub.s32 %s16, %s28
    %s30 = ssub.s32 %s17, %s24
    %s31 = sor.u32 %s29, %s30
    %p32 = scmp.eq.s32.totalorder %s31, 0
    %s34 = sadd.s32 %s33, 1
    %s35 = scalar_select %p32, %s33, %s34
    %p38 = pneg %p32
    %p39 = scmp.eq.s32.totalorder %s9, 1
    %p40 = por %p38, %p39
    %p41 = scmp.ne.s32.totalorder %s33, %s36
    %p42 = scmp.eq.s32.totalorder %s9, 0
    %p43 = por %p41, %p42
    %p44 = scmp.ne.s32.totalorder %s33, %s36
    %p45 = scmp.eq.s32.totalorder %s14, 1
    %p46 = por %p44, %p45
    %p47 = scmp.ne.s32.totalorder %s36, %s37
    %p48 = scmp.eq.s32.totalorder %s14, 0
    %p49 = por %p47, %p48
    %p50 = scmp.ne.s32.totalorder %s36, %s37
    %p51 = scmp.eq.s32.totalorder %s15, 1
    %p52 = por %p50, %p51
    %p54 = scmp.ne.s32.totalorder %s37, %s53
    %p55 = scmp.eq.s32.totalorder %s15, 0
    %p56 = por %p54, %p55
    %s58 = sadd.s32 %s57, 1
    %p61 = scmp.eq.s32.totalorder %s9, 1
    %p62 = scmp.ne.s32.totalorder %s57, %s59
    %p63 = scmp.eq.s32.totalorder %s9, 0
    %p64 = por %p62, %p63
    %p65 = scmp.ne.s32.totalorder %s57, %s59
    %p66 = scmp.eq.s32.totalorder %s14, 1
    %p67 = por %p65, %p66
    %p68 = scmp.ne.s32.totalorder %s59, %s60
    %p69 = scmp.eq.s32.totalorder %s14, 0
    %p70 = por %p68, %p69
    %p71 = scmp.ne.s32.totalorder %s59, %s60
    %p72 = scmp.eq.s32.totalorder %s15, 1
    %p73 = por %p71, %p72
    %p75 = scmp.ne.s32.totalorder %s60, %s74
    %p76 = scmp.eq.s32.totalorder %s15, 0
    %p77 = por %p75, %p76
    %s79 = sadd.s32 %s78, 1
    %p82 = scmp.eq.s32.totalorder %s9, 1
    %p83 = scmp.ne.s32.totalorder %s78, %s80
    %p84 = scmp.eq.s32.totalorder %s9, 0
    %p85 = por %p83, %p84
    %p86 = scmp.ne.s32.totalorder %s78, %s80
    %p87 = scmp.eq.s32.totalorder %s14, 1
    %p88 = por %p86, %p87
    %p89 = scmp.ne.s32.totalorder %s80, %s81
    %p90 = scmp.eq.s32.totalorder %s14, 0
    %p91 = por %p89, %p90
    %p92 = scmp.ne.s32.totalorder %s80, %s81
    %p93 = scmp.eq.s32.totalorder %s15, 1
    %p94 = por %p92, %p93
    %p96 = scmp.ne.s32.totalorder %s81, %s95
    %p97 = scmp.eq.s32.totalorder %s15, 0
    %p98 = por %p96, %p97
    %s99 = ssub.s32 %s16, %s28
    %s100 = ssub.s32 %s17, %s24
    %s101 = sor.u32 %s99, %s100
    %p102 = scmp.eq.s32.totalorder %s101, 0
    %s104 = sadd.s32 %s103, 1
    %s105 = scalar_select %p102, %s103, %s104
    %p108 = pneg %p102
    %p109 = scmp.eq.s32.totalorder %s9, 1
    %p110 = por %p108, %p109
    %p111 = scmp.ne.s32.totalorder %s103, %s106
    %p112 = scmp.eq.s32.totalorder %s9, 0
    %p113 = por %p111, %p112
    %p114 = scmp.ne.s32.totalorder %s103, %s106
    %p115 = scmp.eq.s32.totalorder %s14, 1
    %p116 = por %p114, %p115
    %p117 = scmp.ne.s32.totalorder %s106, %s107
    %p118 = scmp.eq.s32.totalorder %s14, 0
    %p119 = por %p117, %p118
    %p120 = scmp.ne.s32.totalorder %s106, %s107
    %p121 = scmp.eq.s32.totalorder %s15, 1
    %p122 = por %p120, %p121
    %p124 = scmp.ne.s32.totalorder %s107, %s123
    %p125 = scmp.eq.s32.totalorder %s15, 0
    %p126 = por %p124, %p125
    %p127 = scmp.le.s32.totalorder 1, %s9
    %p128 = scmp.lt.s32.totalorder %s9, 3
    %p129 = pnand %p127, %p128
    %p130 = pneg %p129
    // Predicated region
    $region9: #{layernorm_nchw.1} parent=5 // pred_check
      _
    $region10: #{layernorm_nchw.1} parent=5 // pred_check_branch
      %132 = sbr.rel (%p129) target = $region12
    $region11: #{layernorm_nchw.1} parent=5 // pred_region
      %s133 = ssub.s32 %s9, 1
      // Predicated region
      $region13: #{layernorm_nchw.1} parent=11 // pred_check
        %p134 = pneg %p70
      $region14: #{layernorm_nchw.1} parent=11 // pred_check_branch
        %136 = sbr.rel (%p134) target = $region16
      $region15: #{layernorm_nchw.1} parent=11 // pred_region
        _
      $region16: #{layernorm_nchw.1} parent=11 // pred_fallthru
        _
      // Predicated region
      $region17: #{layernorm_nchw.1} parent=11 // pred_check
        %p137 = pneg %p91
      $region18: #{layernorm_nchw.1} parent=11 // pred_check_branch
        %139 = sbr.rel (%p137) target = $region20
      $region19: #{layernorm_nchw.1} parent=11 // pred_region
        _
      $region20: #{layernorm_nchw.1} parent=11 // pred_fallthru
        _
    $region12: #{layernorm_nchw.1} parent=5 // pred_fallthru
      _
    %p140 = scmp.lt.s32.totalorder %s9, 2
    // Predicated region
    $region21: #{layernorm_nchw.1} parent=5 // pred_check
      %p141 = pneg %p140
    $region22: #{layernorm_nchw.1} parent=5 // pred_check_branch
      %143 = sbr.rel (%p141) target = $region24
    $region23: #{layernorm_nchw.1} parent=5 // pred_region
      // Predicated region
      $region25: #{layernorm_nchw.1} parent=23 // pred_check
        %p144 = pneg %p43
      $region26: #{layernorm_nchw.1} parent=23 // pred_check_branch
        %146 = sbr.rel (%p144) target = $region28
      $region27: #{layernorm_nchw.1} parent=23 // pred_region
        %s147 = smul.u32 2, %s17
        %p148 = scmp.lt.s32.totalorder %s16, 1
        %s149 = scalar_select %p148, %s16, 1
        %p150 = scmp.lt.s32.totalorder %s147, 1
        %s151 = scalar_select %p150, %s147, 1
        %s152 = smul.addr %s149, 8
        %s153 = sadd.s32 %s151, %s152
        %s154 = smul.addr %s153, 8
        %s155 = scalar_lea.vmem %s0, %s154
        %s156 = smul.u32 2, %s17
      $region28: #{layernorm_nchw.1} parent=23 // pred_fallthru
        _
    $region24: #{layernorm_nchw.1} parent=5 // pred_fallthru
      _
    %p157 = scmp.le.s32.totalorder 1, %s9
    %p158 = scmp.lt.s32.totalorder %s9, 3
    %p159 = pnand %p157, %p158
    %p160 = pneg %p159
    // Predicated region
    $region29: #{layernorm_nchw.1} parent=5 // pred_check
      _
    $region30: #{layernorm_nchw.1} parent=5 // pred_check_branch
      %162 = sbr.rel (%p159) target = $region32
    $region31: #{layernorm_nchw.1} parent=5 // pred_region
      %s163 = ssub.s32 %s9, 1
      %s164 = smul.u32 2, %s19
      %p165 = scmp.lt.s32.totalorder %s18, 1
      %s166 = scalar_select %p165, %s18, 1
      %p167 = scmp.lt.s32.totalorder %s164, 1
      %s168 = scalar_select %p167, %s164, 1
      %s169 = smul.addr %s166, 8
      %s170 = sadd.s32 %s168, %s169
      %s171 = smul.addr %s170, 8
      %s172 = scalar_lea.vmem %s0, %s171
      %p173 = pneg %p49
      %p174 = pneg %p46
      %p175 = pneg %p70
      %p176 = pneg %p67
      %p177 = pneg %p91
      %p178 = pneg %p88
      %p179 = pneg %p119
      %p180 = pneg %p116
      %s181 = smul.u32 2, %s19
      %p182 = scmp.lt.s32.totalorder %s18, 1
      %s183 = scalar_select %p182, %s18, 1
      %p184 = scmp.lt.s32.totalorder %s181, 1
      %s185 = scalar_select %p184, %s181, 1
      %s186 = smul.addr %s183, 8
      %s187 = sadd.s32 %s185, %s186
      %s188 = smul.addr %s187, 8
      %s189 = scalar_lea.vmem %s3, %s188
      %s190 = smul.u32 2, %s19
      %p191 = scmp.lt.s32.totalorder %s18, 1
      %s192 = scalar_select %p191, %s18, 1
      %p193 = scmp.lt.s32.totalorder %s190, 1
      %s194 = scalar_select %p193, %s190, 1
      %s195 = smul.addr %s192, 8
      %s196 = sadd.s32 %s194, %s195
      %s197 = smul.addr %s196, 8
      %s198 = scalar_lea.vmem %s0, %s197
      %s199 = smul.u32 2, %s19
      %s200 = smul.u32 2, %s19
      %p201 = scmp.lt.s32.totalorder %s18, 1
      %s202 = scalar_select %p201, %s18, 1
      %p203 = scmp.lt.s32.totalorder %s200, 1
      %s204 = scalar_select %p203, %s200, 1
      %s205 = smul.addr %s202, 8
      %s206 = sadd.s32 %s204, %s205
      %s207 = smul.addr %s206, 8
      %s208 = scalar_lea.vmem %s3, %s207
      %s209 = smul.u32 2, %s19
      %v210 = vld [vmem:[%s198] sm:$0xff]
      %v211 = vld [vmem:[%s198 + $0x8] sm:$0xff]
      %v212 = vld [vmem:[%s198 + $0x10] sm:$0xff]
      %v213 = vld [vmem:[%s198 + $0x18] sm:$0xff]
      %v214 = vld [vmem:[%s198 + $0x20] sm:$0xff]
      %v215 = vld [vmem:[%s198 + $0x28] sm:$0xff]
      %v216 = vld [vmem:[%s198 + $0x30] sm:$0xff]
      %v217 = vld [vmem:[%s198 + $0x38] sm:$0xff]
      %v218 = vadd.f32 %v210, %v212
      %v219 = vadd.f32 %v218, %v214
      %v220 = vadd.f32 %v219, %v216
      %v221 = vrot.slane %v220, 4
      %v222 = vadd.f32 %v220, %v221
      %v223 = vrot.slane %v222, 2
      %v224 = vadd.f32 %v222, %v223
      %v225 = vrot.slane %v224, 1
      %v226 = vadd.f32 %v224, %v225
      %v227 = vadd.f32 %v211, %v213
      %v228 = vadd.f32 %v227, %v215
      %v229 = vadd.f32 %v228, %v217
      %v230 = vrot.slane %v229, 4
      %v231 = vadd.f32 %v229, %v230
      %v232 = vrot.slane %v231, 2
      %v233 = vadd.f32 %v231, %v232
      %v234 = vrot.slane %v233, 1
      %v235 = vadd.f32 %v233, %v234
      %v236 = vmul.f32 %v226, 0.03125
      %v237 = vmul.f32 %v235, 0.03125
      %v238 = vsub.f32 %v210, %v236
      %v239 = vsub.f32 %v211, %v237
      %v240 = vsub.f32 %v212, %v236
      %v241 = vsub.f32 %v213, %v237
      %v242 = vsub.f32 %v214, %v236
      %v243 = vsub.f32 %v215, %v237
      %v244 = vsub.f32 %v216, %v236
      %v245 = vsub.f32 %v217, %v237
      %v246 = vmul.f32 %v238, %v238
      %v247 = vmul.f32 %v239, %v239
      %v248 = vmul.f32 %v240, %v240
      %v249 = vmul.f32 %v241, %v241
      %v250 = vmul.f32 %v242, %v242
      %v251 = vmul.f32 %v243, %v243
      %v252 = vmul.f32 %v244, %v244
      %v253 = vmul.f32 %v245, %v245
      %v254 = vadd.f32 %v246, %v248
      %v255 = vadd.f32 %v254, %v250
      %v256 = vadd.f32 %v255, %v252
      %v257 = vrot.slane %v256, 4
      %v258 = vadd.f32 %v256, %v257
      %v259 = vrot.slane %v258, 2
      %v260 = vadd.f32 %v258, %v259
      %v261 = vrot.slane %v260, 1
      %v262 = vadd.f32 %v260, %v261
      %v263 = vadd.f32 %v247, %v249
      %v264 = vadd.f32 %v263, %v251
      %v265 = vadd.f32 %v264, %v253
      %v266 = vrot.slane %v265, 4
      %v267 = vadd.f32 %v265, %v266
      %v268 = vrot.slane %v267, 2
      %v269 = vadd.f32 %v267, %v268
      %v270 = vrot.slane %v269, 1
      %v271 = vadd.f32 %v269, %v270
      %v272 = vmul.f32 %v262, 0.03125
      %v273 = vmul.f32 %v271, 0.03125
      %v274 = vrsqrt.pop %v272
      %v275 = vmul.f32 %v272, %v274
      %vm276 = vcmp.eq.f32.partialorder %v272, inf
      %v277 = vsel %vm276, %v272, %v275
      %vm278 = vcmp.eq.f32.partialorder %v272, 0.0
      %v279 = vand.u32 %v272, 2147483648
      %v280 = vsel %vm278, %v279, %v277
      %v281 = vrsqrt.pop %v273
      %v282 = vmul.f32 %v273, %v281
      %vm283 = vcmp.eq.f32.partialorder %v273, inf
      %v284 = vsel %vm283, %v273, %v282
      %vm285 = vcmp.eq.f32.partialorder %v273, 0.0
      %v286 = vand.u32 %v273, 2147483648
      %v287 = vsel %vm285, %v286, %v284
      %v288 = vadd.f32 %v280, 1e-05
      %v289 = vadd.f32 %v287, 1e-05
      %v290 = vrcp.pop %v288
      %v291 = vrcp.pop %v289
      %v292 = vld [vmem:[%s1] sm:$0xff]
      %v293 = vld [vmem:[%s1 + $0x8] sm:$0xff]
      %v294 = vld [vmem:[%s1 + $0x10] sm:$0xff]
      %v295 = vld [vmem:[%s1 + $0x18] sm:$0xff]
      %v296 = vld [vmem:[%s2] sm:$0xff]
      %v297 = vld [vmem:[%s2 + $0x8] sm:$0xff]
      %v298 = vld [vmem:[%s2 + $0x10] sm:$0xff]
      %v299 = vld [vmem:[%s2 + $0x18] sm:$0xff]
      %v300 = vmul.f32 %v238, %v290
      %v301 = vmul.f32 %v239, %v291
      %v302 = vmul.f32 %v240, %v290
      %v303 = vmul.f32 %v241, %v291
      %v304 = vmul.f32 %v242, %v290
      %v305 = vmul.f32 %v243, %v291
      %v306 = vmul.f32 %v244, %v290
      %v307 = vmul.f32 %v245, %v291
      %309 = vset.pattern.permute.xlu0 0
      %310 = vperm.xlu0 %309, %v292
      %v311 = vpop.permute.xlu0 %310
      %314 = vset.pattern.permute.xlu0 0
      %315 = vperm.xlu0 %314, %v293
      %v316 = vpop.permute.xlu0 %315
      %319 = vset.pattern.permute.xlu0 0
      %320 = vperm.xlu0 %319, %v294
      %v321 = vpop.permute.xlu0 %320
      %324 = vset.pattern.permute.xlu0 0
      %325 = vperm.xlu0 %324, %v295
      %v326 = vpop.permute.xlu0 %325
      %v328 = vmul.f32 %v300, %v311
      %v329 = vmul.f32 %v301, %v311
      %v330 = vmul.f32 %v302, %v316
      %v331 = vmul.f32 %v303, %v316
      %v332 = vmul.f32 %v304, %v321
      %v333 = vmul.f32 %v305, %v321
      %v334 = vmul.f32 %v306, %v326
      %v335 = vmul.f32 %v307, %v326
      %337 = vset.pattern.permute.xlu0 0
      %338 = vperm.xlu0 %337, %v296
      %v339 = vpop.permute.xlu0 %338
      %342 = vset.pattern.permute.xlu0 0
      %343 = vperm.xlu0 %342, %v297
      %v344 = vpop.permute.xlu0 %343
      %347 = vset.pattern.permute.xlu0 0
      %348 = vperm.xlu0 %347, %v298
      %v349 = vpop.permute.xlu0 %348
      %352 = vset.pattern.permute.xlu0 0
      %353 = vperm.xlu0 %352, %v299
      %v354 = vpop.permute.xlu0 %353
      %v356 = vadd.f32 %v328, %v339
      %v357 = vadd.f32 %v329, %v339
      %v358 = vadd.f32 %v330, %v344
      %v359 = vadd.f32 %v331, %v344
      %v360 = vadd.f32 %v332, %v349
      %v361 = vadd.f32 %v333, %v349
      %v362 = vadd.f32 %v334, %v354
      %v363 = vadd.f32 %v335, %v354
      %364 = vst [vmem:[%s208] sm:$0xff] %v356
      %365 = vst [vmem:[%s208 + $0x8] sm:$0xff] %v357
      %366 = vst [vmem:[%s208 + $0x10] sm:$0xff] %v358
      %367 = vst [vmem:[%s208 + $0x18] sm:$0xff] %v359
      %368 = vst [vmem:[%s208 + $0x20] sm:$0xff] %v360
      %369 = vst [vmem:[%s208 + $0x28] sm:$0xff] %v361
      %370 = vst [vmem:[%s208 + $0x30] sm:$0xff] %v362
      %371 = vst [vmem:[%s208 + $0x38] sm:$0xff] %v363
      %s372 = smul.u32 2, %s19
      %p373 = scmp.lt.s32.totalorder %s18, 1
      %s374 = scalar_select %p373, %s18, 1
      %p375 = scmp.lt.s32.totalorder %s372, 1
      %s376 = scalar_select %p375, %s372, 1
      %s377 = smul.addr %s374, 8
      %s378 = sadd.s32 %s376, %s377
      %s379 = smul.addr %s378, 8
      %s380 = scalar_lea.vmem %s3, %s379
      // Predicated region
      $region33: #{layernorm_nchw.1} parent=31 // pred_check
        %p381 = pneg %p116
      $region34: #{layernorm_nchw.1} parent=31 // pred_check_branch
        %383 = sbr.rel (%p381) target = $region36
      $region35: #{layernorm_nchw.1} parent=31 // pred_region
        %s384 = smul.u32 2, %s19
      $region36: #{layernorm_nchw.1} parent=31 // pred_fallthru
        _
    $region32: #{layernorm_nchw.1} parent=5 // pred_fallthru
      _
    %p385 = scmp.le.s32.totalorder 2, %s9
    // Predicated region
    $region37: #{layernorm_nchw.1} parent=5 // pred_check
      %p386 = pneg %p385
    $region38: #{layernorm_nchw.1} parent=5 // pred_check_branch
      %388 = sbr.rel (%p386) target = $region40
    $region39: #{layernorm_nchw.1} parent=5 // pred_region
      %s389 = ssub.s32 %s9, 2
      // Predicated region
      $region41: #{layernorm_nchw.1} parent=39 // pred_check
        %p390 = pneg %p122
      $region42: #{layernorm_nchw.1} parent=39 // pred_check_branch
        %392 = sbr.rel (%p390) target = $region44
      $region43: #{layernorm_nchw.1} parent=39 // pred_region
        %s393 = smul.u32 2, %s21
        %p394 = scmp.lt.s32.totalorder %s20, 1
        %s395 = scalar_select %p394, %s20, 1
        %p396 = scmp.lt.s32.totalorder %s393, 1
        %s397 = scalar_select %p396, %s393, 1
        %s398 = smul.addr %s395, 8
        %s399 = sadd.s32 %s397, %s398
        %s400 = smul.addr %s399, 8
        %s401 = scalar_lea.vmem %s3, %s400
      $region44: #{layernorm_nchw.1} parent=39 // pred_fallthru
        _
    $region40: #{layernorm_nchw.1} parent=5 // pred_fallthru
      _
  $region6: #{layernorm_nchw.1} parent=0 // loop_footer
    %s13 = sadd.s32 1, %s9
  $region7: #{layernorm_nchw.1} parent=0 // loop_footer_branch
    %8 = sbr.rel target = $region3
  $region8: #{layernorm_nchw.1} parent=0 // loop_exit
    _

</llo_original>
